<compile_context>
chip_gen: v7x
topology: tpu7x:2x2x1
jax: 0.10.0
libtpu: 0.0.40
codegen_flags: <defaults>
</compile_context>

<pallas_src>
import functools

import jax
import jax.numpy as jnp
from jax.experimental import pallas as pl
from jax.experimental.pallas import tpu as pltpu


LANE = 128      # vreg lane width  (last dim)
SUBLANE = 8     # vreg sublane width (second-to-last dim, f32)


def _round_up(x, m):
    return ((x + m - 1) // m) * m


def _choose_batch_tile(batch, max_batch_tile):
    """Batch tile: multiple of 8 rows; >= 2 grid steps when possible (v7x megacore)."""
    if batch <= SUBLANE:
        return batch                                   # single block == full dim
    tb = min(_round_up(batch, SUBLANE), max_batch_tile)
    if pl.cdiv(batch, tb) < 2:
        tb = max(SUBLANE, _round_up(pl.cdiv(batch, 2), SUBLANE))
    return tb


# ----------------------------- Pallas kernel --------------------------------

def _fused_mlp_kernel(*refs, num_linear):
    """refs = (x, w0, b0, w1, b1, ..., out).  Whole MLP in one kernel body:
    weights stay resident in VMEM, intermediates never touch HBM."""
    x_ref = refs[0]
    out_ref = refs[-1]

    h = x_ref[...]
    for i in range(num_linear):
        w_ref = refs[1 + 2 * i]
        b_ref = refs[2 + 2 * i]
        # Cast LHS to the weight dtype (bf16 path feeds the MXU natively);
        # always accumulate in f32.
        h = jnp.dot(h.astype(w_ref.dtype), w_ref[...],
                    preferred_element_type=jnp.float32)
        h = h + b_ref[...]
        if i != num_linear - 1:
            h = jnp.tanh(h)
    out_ref[...] = h.astype(out_ref.dtype)


# --------------------------- parameter packing -------------------------------

def pack_mlp_params(params, *, param_dtype=jnp.float32):
    """Pre-transpose nn.Linear-style (out, in) weights to (in, out) ONCE.

    Interior (hidden) feature dims are zero-padded to 128 lanes for lane-aligned
    MXU tiles; the first layer's input dim and the last layer's output dim stay at
    their raw sizes so the kernel consumes raw x tiles and produces the raw
    (B, ac_dim) output directly (no per-call pad / slice passes)."""
    n = len(params)
    packed_w, packed_b = [], []
    for idx, (w, b) in enumerate(params):              # w is (out, in)
        dout, din = w.shape
        din_p = din if idx == 0 else _round_up(din, LANE)
        dout_p = dout if idx == n - 1 else _round_up(dout, LANE)
        w_t = jnp.zeros((din_p, dout_p), jnp.float32).at[:din, :dout].set(w.T)
        b_p = jnp.zeros((1, dout_p), jnp.float32).at[0, :dout].set(b)
        packed_w.append(w_t.astype(param_dtype))
        packed_b.append(b_p)                           # bias stays f32 (f32 accumulate)
    return packed_w, packed_b


# -------------------------------- wrapper ------------------------------------

def mlp_forward(x, packed_w, packed_b, *, max_batch_tile=1024,
                single_buffer_resident=True):
    """out = MLP(x) (tanh hidden, linear output) with one fused pallas_call."""
    batch, din = x.shape
    assert packed_w[0].shape[0] == din
    ac_dim = packed_w[-1].shape[1]
    num_linear = len(packed_w)

    tb = _choose_batch_tile(batch, max_batch_tile)
    grid = (pl.cdiv(batch, tb),)

    # Resident blocks (constant index_map) don't need double-buffering.
    resident_kwargs = (
        dict(pipeline_mode=pl.Buffered(1)) if single_buffer_resident else {})

    in_specs = [pl.BlockSpec((tb, din), lambda i: (i, 0))]      # streamed x tile
    operands = [x]
    for w, b in zip(packed_w, packed_b):
        di, do = w.shape
        in_specs.append(pl.BlockSpec((di, do), lambda i: (0, 0), **resident_kwargs))
        in_specs.append(pl.BlockSpec((1, do), lambda i: (0, 0), **resident_kwargs))
        operands += [w, b]

    # VMEM budget from actual usage: resident params (x buffer count) +
    # double-buffered x/out tiles + intermediate activations, with headroom.
    nbytes = lambda a: a.size * a.dtype.itemsize
    resident_buffers = 1 if single_buffer_resident else 2
    resident_bytes = resident_buffers * (
        sum(map(nbytes, packed_w)) + sum(map(nbytes, packed_b)))
    stream_bytes = 2 * 4 * (tb * din + tb * ac_dim)             # double-buffered
    act_bytes = 2 * 4 * tb * max(w.shape[1] for w in packed_w)
    need = resident_bytes + stream_bytes + act_bytes
    vmem_limit = int(min(max(need * 3 // 2 + (4 << 20), 32 << 20), 100 << 20))
    # TODO(synk): for very large `size` on v7x (64 MiB VMEM), fall back to a
    # K/N-tiled ("arbitrary") grid axis instead of holding whole layers resident.

    kernel = functools.partial(_fused_mlp_kernel, num_linear=num_linear)

    return pl.pallas_call(
        kernel,
        out_shape=jax.ShapeDtypeStruct((batch, ac_dim), jnp.float32),
        grid=grid,
        in_specs=in_specs,
        out_specs=pl.BlockSpec((tb, ac_dim), lambda i: (i, 0)),
        compiler_params=pltpu.CompilerParams(
            dimension_semantics=("parallel",),
            vmem_limit_bytes=vmem_limit),
    )(*operands)


# --------------------------- parameter construction --------------------------

def xavier_uniform(key, fan_out, fan_in):
    bound = float(jnp.sqrt(6.0 / (fan_in + fan_out)))
    return jax.random.uniform(key, (fan_out, fan_in), jnp.float32,
                              minval=-bound, maxval=bound)


def init_mlp_params(key, input_size, output_size, n_layers, size):
    dims = [input_size] + [size] * n_layers + [output_size]
    params = []
    for i in range(len(dims) - 1):
        key, sub = jax.random.split(key)
        w = xavier_uniform(sub, dims[i + 1], dims[i])   # (out, in) like nn.Linear
        b = jnp.zeros((dims[i + 1],), jnp.float32)       # nn.init.zeros_
        params.append((w, b))
    return params


def mlp_reference(x, params):
    out = x
    for i, (w, b) in enumerate(params):
        out = out @ w.T + b
        if i != len(params) - 1:
            out = jnp.tanh(out)
    return out


# ---------------------------------- main -------------------------------------

if __name__ == "__main__":
    key = jax.random.PRNGKey(0)

    input_size, output_size, n_layers, size = 16, 4, 2, 32
    batch = 32                     # -> 2 batch-grid steps (both v7x TCs busy)

    kp, kx = jax.random.split(key)
    params = init_mlp_params(kp, input_size, output_size, n_layers, size)
    x = jax.random.normal(kx, (batch, input_size), jnp.float32)

    ref = mlp_reference(x, params)

    # f32 weights: exact match with the reference module.
    pw32, pb32 = pack_mlp_params(params, param_dtype=jnp.float32)
    try:
        out_f32 = mlp_forward(x, pw32, pb32, single_buffer_resident=True)
        jax.block_until_ready(out_f32)
        single_buffer = True
    except Exception:
        # Fallback if this JAX build rejects pl.Buffered(1) on pallas_call specs.
        out_f32 = mlp_forward(x, pw32, pb32, single_buffer_resident=False)
        jax.block_until_ready(out_f32)
        single_buffer = False
    assert out_f32.shape == (batch, output_size)
    assert jnp.allclose(out_f32, ref, atol=1e-5), "f32 forward mismatch"

    # bf16 weight storage, f32 MXU accumulation (halves resident VMEM bytes).
    pwbf, pbbf = pack_mlp_params(params, param_dtype=jnp.bfloat16)
    out_bf16 = mlp_forward(x, pwbf, pbbf, single_buffer_resident=single_buffer)
    jax.block_until_ready(out_bf16)
    assert jnp.allclose(out_bf16, ref, atol=3e-2), "bf16 forward mismatch"

    print("KERNEL_OK")
</pallas_src>

<mosaic_0001>
module attributes {stable_mosaic.version = 11 : i64} {
  func.func @_fused_mlp_kernel(%arg0: i32, %arg1: memref<16x16xf32, #tpu.memory_space<vmem>>, %arg2: memref<16x128xf32, #tpu.memory_space<vmem>>, %arg3: memref<1x128xf32, #tpu.memory_space<vmem>>, %arg4: memref<128x128xf32, #tpu.memory_space<vmem>>, %arg5: memref<1x128xf32, #tpu.memory_space<vmem>>, %arg6: memref<128x4xf32, #tpu.memory_space<vmem>>, %arg7: memref<1x4xf32, #tpu.memory_space<vmem>>, %arg8: memref<16x4xf32, #tpu.memory_space<vmem>>) attributes {dimension_semantics = [#tpu.dimension_semantics<parallel>], iteration_bounds = array<i64: 2>, scalar_prefetch = 0 : i64, scratch_operands = 0 : i64, tpu.core_type = #tpu.core_type<tc>, window_params = [{transform_indices = @transform_0, window_bounds = array<i64: 16, 16>}, {pipeline_mode = #tpu.pipeline_mode<synchronous>, transform_indices = @transform_1, window_bounds = array<i64: 16, 128>}, {pipeline_mode = #tpu.pipeline_mode<synchronous>, transform_indices = @transform_2, window_bounds = array<i64: 1, 128>}, {pipeline_mode = #tpu.pipeline_mode<synchronous>, transform_indices = @transform_3, window_bounds = array<i64: 128, 128>}, {pipeline_mode = #tpu.pipeline_mode<synchronous>, transform_indices = @transform_4, window_bounds = array<i64: 1, 128>}, {pipeline_mode = #tpu.pipeline_mode<synchronous>, transform_indices = @transform_5, window_bounds = array<i64: 128, 4>}, {pipeline_mode = #tpu.pipeline_mode<synchronous>, transform_indices = @transform_6, window_bounds = array<i64: 1, 4>}, {transform_indices = @transform_7, window_bounds = array<i64: 16, 4>}]} {
    %c0 = arith.constant 0 : index
    %c0_0 = arith.constant 0 : index
    %0 = vector.load %arg1[%c0, %c0_0] : memref<16x16xf32, #tpu.memory_space<vmem>>, vector<16x16xf32>
    %c0_1 = arith.constant 0 : index
    %c0_2 = arith.constant 0 : index
    %1 = vector.load %arg2[%c0_1, %c0_2] : memref<16x128xf32, #tpu.memory_space<vmem>>, vector<16x128xf32>
    %cst = arith.constant dense<0.000000e+00> : vector<16x128xf32>
    %2 = tpu.matmul %0, %1, %cst {dimension_numbers = #tpu.dot_dimension_numbers<[1], [0], [0], [1], [0, 0, 1, 1], [], []>} : vector<16x16xf32>, vector<16x128xf32>, vector<16x128xf32> -> vector<16x128xf32>
    %c0_3 = arith.constant 0 : index
    %c0_4 = arith.constant 0 : index
    %3 = vector.load %arg3[%c0_3, %c0_4] : memref<1x128xf32, #tpu.memory_space<vmem>>, vector<1x128xf32>
    %4 = vector.broadcast %3 : vector<1x128xf32> to vector<16x128xf32>
    %5 = arith.addf %2, %4 : vector<16x128xf32>
    %6 = math.tanh %5 : vector<16x128xf32>
    %c0_5 = arith.constant 0 : index
    %c0_6 = arith.constant 0 : index
    %7 = vector.load %arg4[%c0_5, %c0_6] : memref<128x128xf32, #tpu.memory_space<vmem>>, vector<128x128xf32>
    %cst_7 = arith.constant dense<0.000000e+00> : vector<16x128xf32>
    %8 = tpu.matmul %6, %7, %cst_7 {dimension_numbers = #tpu.dot_dimension_numbers<[1], [0], [0], [1], [0, 0, 1, 1], [], []>} : vector<16x128xf32>, vector<128x128xf32>, vector<16x128xf32> -> vector<16x128xf32>
    %c0_8 = arith.constant 0 : index
    %c0_9 = arith.constant 0 : index
    %9 = vector.load %arg5[%c0_8, %c0_9] : memref<1x128xf32, #tpu.memory_space<vmem>>, vector<1x128xf32>
    %10 = vector.broadcast %9 : vector<1x128xf32> to vector<16x128xf32>
    %11 = arith.addf %8, %10 : vector<16x128xf32>
    %12 = math.tanh %11 : vector<16x128xf32>
    %c0_10 = arith.constant 0 : index
    %c0_11 = arith.constant 0 : index
    %13 = vector.load %arg6[%c0_10, %c0_11] : memref<128x4xf32, #tpu.memory_space<vmem>>, vector<128x4xf32>
    %cst_12 = arith.constant dense<0.000000e+00> : vector<16x4xf32>
    %14 = tpu.matmul %12, %13, %cst_12 {dimension_numbers = #tpu.dot_dimension_numbers<[1], [0], [0], [1], [0, 0, 1, 1], [], []>} : vector<16x128xf32>, vector<128x4xf32>, vector<16x4xf32> -> vector<16x4xf32>
    %c0_13 = arith.constant 0 : index
    %c0_14 = arith.constant 0 : index
    %15 = vector.load %arg7[%c0_13, %c0_14] : memref<1x4xf32, #tpu.memory_space<vmem>>, vector<1x4xf32>
    %16 = vector.broadcast %15 : vector<1x4xf32> to vector<16x4xf32>
    %17 = arith.addf %14, %16 : vector<16x4xf32>
    %c0_15 = arith.constant 0 : index
    %c0_16 = arith.constant 0 : index
    %18 = vector.load %arg8[%c0_15, %c0_16] : memref<16x4xf32, #tpu.memory_space<vmem>>, vector<16x4xf32>
    tpu.vector_store %arg8[%c0_15, %c0_16], %17 {strides = array<i32>} : memref<16x4xf32, #tpu.memory_space<vmem>>, vector<16x4xf32>,
    return
  }
  func.func @transform_0(%arg0: i32) -> (i32, i32) {
    %c0_i32 = arith.constant 0 : i32
    %c0_i32_0 = arith.constant 0 : i32
    return %arg0, %c0_i32 : i32, i32
  }
  func.func @transform_1(%arg0: i32) -> (i32, i32) {
    %c0_i32 = arith.constant 0 : i32
    %c0_i32_0 = arith.constant 0 : i32
    %c0_i32_1 = arith.constant 0 : i32
    return %c0_i32, %c0_i32_0 : i32, i32
  }
  func.func @transform_2(%arg0: i32) -> (i32, i32) {
    %c0_i32 = arith.constant 0 : i32
    %c0_i32_0 = arith.constant 0 : i32
    %c0_i32_1 = arith.constant 0 : i32
    return %c0_i32, %c0_i32_0 : i32, i32
  }
  func.func @transform_3(%arg0: i32) -> (i32, i32) {
    %c0_i32 = arith.constant 0 : i32
    %c0_i32_0 = arith.constant 0 : i32
    %c0_i32_1 = arith.constant 0 : i32
    return %c0_i32, %c0_i32_0 : i32, i32
  }
  func.func @transform_4(%arg0: i32) -> (i32, i32) {
    %c0_i32 = arith.constant 0 : i32
    %c0_i32_0 = arith.constant 0 : i32
    %c0_i32_1 = arith.constant 0 : i32
    return %c0_i32, %c0_i32_0 : i32, i32
  }
  func.func @transform_5(%arg0: i32) -> (i32, i32) {
    %c0_i32 = arith.constant 0 : i32
    %c0_i32_0 = arith.constant 0 : i32
    %c0_i32_1 = arith.constant 0 : i32
    return %c0_i32, %c0_i32_0 : i32, i32
  }
  func.func @transform_6(%arg0: i32) -> (i32, i32) {
    %c0_i32 = arith.constant 0 : i32
    %c0_i32_0 = arith.constant 0 : i32
    %c0_i32_1 = arith.constant 0 : i32
    return %c0_i32, %c0_i32_0 : i32, i32
  }
  func.func @transform_7(%arg0: i32) -> (i32, i32) {
    %c0_i32 = arith.constant 0 : i32
    %c0_i32_0 = arith.constant 0 : i32
    return %arg0, %c0_i32 : i32, i32
  }
}

module attributes {stable_mosaic.version = 11 : i64} {
  func.func @_fused_mlp_kernel(%arg0: i32, %arg1: memref<16x16xf32, #tpu.memory_space<vmem>>, %arg2: memref<16x128xf32, #tpu.memory_space<vmem>>, %arg3: memref<1x128xf32, #tpu.memory_space<vmem>>, %arg4: memref<128x128xf32, #tpu.memory_space<vmem>>, %arg5: memref<1x128xf32, #tpu.memory_space<vmem>>, %arg6: memref<128x4xf32, #tpu.memory_space<vmem>>, %arg7: memref<1x4xf32, #tpu.memory_space<vmem>>, %arg8: memref<16x4xf32, #tpu.memory_space<vmem>>) attributes {dimension_semantics = [#tpu.dimension_semantics<parallel>], iteration_bounds = array<i64: 2>, scalar_prefetch = 0 : i64, scratch_operands = 0 : i64, tpu.core_type = #tpu.core_type<tc>, window_params = [{transform_indices = @transform_0, window_bounds = array<i64: 16, 16>}, {pipeline_mode = #tpu.pipeline_mode<synchronous>, transform_indices = @transform_1, window_bounds = array<i64: 16, 128>}, {pipeline_mode = #tpu.pipeline_mode<synchronous>, transform_indices = @transform_2, window_bounds = array<i64: 1, 128>}, {pipeline_mode = #tpu.pipeline_mode<synchronous>, transform_indices = @transform_3, window_bounds = array<i64: 128, 128>}, {pipeline_mode = #tpu.pipeline_mode<synchronous>, transform_indices = @transform_4, window_bounds = array<i64: 1, 128>}, {pipeline_mode = #tpu.pipeline_mode<synchronous>, transform_indices = @transform_5, window_bounds = array<i64: 128, 4>}, {pipeline_mode = #tpu.pipeline_mode<synchronous>, transform_indices = @transform_6, window_bounds = array<i64: 1, 4>}, {transform_indices = @transform_7, window_bounds = array<i64: 16, 4>}]} {
    %c0 = arith.constant 0 : index
    %c0_0 = arith.constant 0 : index
    %0 = vector.load %arg1[%c0, %c0_0] : memref<16x16xf32, #tpu.memory_space<vmem>>, vector<16x16xf32>
    %c0_1 = arith.constant 0 : index
    %c0_2 = arith.constant 0 : index
    %1 = vector.load %arg2[%c0_1, %c0_2] : memref<16x128xf32, #tpu.memory_space<vmem>>, vector<16x128xf32>
    %cst = arith.constant dense<0.000000e+00> : vector<16x128xf32>
    %2 = tpu.matmul %0, %1, %cst {dimension_numbers = #tpu.dot_dimension_numbers<[1], [0], [0], [1], [0, 0, 1, 1], [], []>} : vector<16x16xf32>, vector<16x128xf32>, vector<16x128xf32> -> vector<16x128xf32>
    %c0_3 = arith.constant 0 : index
    %c0_4 = arith.constant 0 : index
    %3 = vector.load %arg3[%c0_3, %c0_4] : memref<1x128xf32, #tpu.memory_space<vmem>>, vector<1x128xf32>
    %4 = vector.broadcast %3 : vector<1x128xf32> to vector<16x128xf32>
    %5 = arith.addf %2, %4 : vector<16x128xf32>
    %6 = math.tanh %5 : vector<16x128xf32>
    %c0_5 = arith.constant 0 : index
    %c0_6 = arith.constant 0 : index
    %7 = vector.load %arg4[%c0_5, %c0_6] : memref<128x128xf32, #tpu.memory_space<vmem>>, vector<128x128xf32>
    %cst_7 = arith.constant dense<0.000000e+00> : vector<16x128xf32>
    %8 = tpu.matmul %6, %7, %cst_7 {dimension_numbers = #tpu.dot_dimension_numbers<[1], [0], [0], [1], [0, 0, 1, 1], [], []>} : vector<16x128xf32>, vector<128x128xf32>, vector<16x128xf32> -> vector<16x128xf32>
    %c0_8 = arith.constant 0 : index
    %c0_9 = arith.constant 0 : index
    %9 = vector.load %arg5[%c0_8, %c0_9] : memref<1x128xf32, #tpu.memory_space<vmem>>, vector<1x128xf32>
    %10 = vector.broadcast %9 : vector<1x128xf32> to vector<16x128xf32>
    %11 = arith.addf %8, %10 : vector<16x128xf32>
    %12 = math.tanh %11 : vector<16x128xf32>
    %c0_10 = arith.constant 0 : index
    %c0_11 = arith.constant 0 : index
    %13 = vector.load %arg6[%c0_10, %c0_11] : memref<128x4xf32, #tpu.memory_space<vmem>>, vector<128x4xf32>
    %cst_12 = arith.constant dense<0.000000e+00> : vector<16x4xf32>
    %14 = tpu.matmul %12, %13, %cst_12 {dimension_numbers = #tpu.dot_dimension_numbers<[1], [0], [0], [1], [0, 0, 1, 1], [], []>} : vector<16x128xf32>, vector<128x4xf32>, vector<16x4xf32> -> vector<16x4xf32>
    %c0_13 = arith.constant 0 : index
    %c0_14 = arith.constant 0 : index
    %15 = vector.load %arg7[%c0_13, %c0_14] : memref<1x4xf32, #tpu.memory_space<vmem>>, vector<1x4xf32>
    %16 = vector.broadcast %15 : vector<1x4xf32> to vector<16x4xf32>
    %17 = arith.addf %14, %16 : vector<16x4xf32>
    %c0_15 = arith.constant 0 : index
    %c0_16 = arith.constant 0 : index
    %18 = vector.load %arg8[%c0_15, %c0_16] : memref<16x4xf32, #tpu.memory_space<vmem>>, vector<16x4xf32>
    tpu.vector_store %arg8[%c0_15, %c0_16], %17 {strides = array<i32>} : memref<16x4xf32, #tpu.memory_space<vmem>>, vector<16x4xf32>,
    return
  }
  func.func @transform_0(%arg0: i32) -> (i32, i32) {
    %c0_i32 = arith.constant 0 : i32
    %c0_i32_0 = arith.constant 0 : i32
    return %arg0, %c0_i32 : i32, i32
  }
  func.func @transform_1(%arg0: i32) -> (i32, i32) {
    %c0_i32 = arith.constant 0 : i32
    %c0_i32_0 = arith.constant 0 : i32
    %c0_i32_1 = arith.constant 0 : i32
    return %c0_i32, %c0_i32_0 : i32, i32
  }
  func.func @transform_2(%arg0: i32) -> (i32, i32) {
    %c0_i32 = arith.constant 0 : i32
    %c0_i32_0 = arith.constant 0 : i32
    %c0_i32_1 = arith.constant 0 : i32
    return %c0_i32, %c0_i32_0 : i32, i32
  }
  func.func @transform_3(%arg0: i32) -> (i32, i32) {
    %c0_i32 = arith.constant 0 : i32
    %c0_i32_0 = arith.constant 0 : i32
    %c0_i32_1 = arith.constant 0 : i32
    return %c0_i32, %c0_i32_0 : i32, i32
  }
  func.func @transform_4(%arg0: i32) -> (i32, i32) {
    %c0_i32 = arith.constant 0 : i32
    %c0_i32_0 = arith.constant 0 : i32
    %c0_i32_1 = arith.constant 0 : i32
    return %c0_i32, %c0_i32_0 : i32, i32
  }
  func.func @transform_5(%arg0: i32) -> (i32, i32) {
    %c0_i32 = arith.constant 0 : i32
    %c0_i32_0 = arith.constant 0 : i32
    %c0_i32_1 = arith.constant 0 : i32
    return %c0_i32, %c0_i32_0 : i32, i32
  }
  func.func @transform_6(%arg0: i32) -> (i32, i32) {
    %c0_i32 = arith.constant 0 : i32
    %c0_i32_0 = arith.constant 0 : i32
    %c0_i32_1 = arith.constant 0 : i32
    return %c0_i32, %c0_i32_0 : i32, i32
  }
  func.func @transform_7(%arg0: i32) -> (i32, i32) {
    %c0_i32 = arith.constant 0 : i32
    %c0_i32_0 = arith.constant 0 : i32
    return %arg0, %c0_i32 : i32, i32
  }
}

</mosaic_0001>

<llo_original>
// kernel: tpu_custom_call.1
$region0: #{tpu_custom_call.1}
  #allocation0 [shape = 'u32[]', space=smem, size = 0x4, offset = 0x4, fixed_abs, tag = 'smem constant byte address 0x4 - core index']
  #allocation1 [shape = 'u32[144,128]{1,0:T(1,128)}', space=vmem, size = 0x12000, scoped, tag = 'internal scratch']
  %s0 = inlined_call_operand.vmem [shape: f32[32,16], index: 0, kind: input, shape index: {}]
  %s1 = inlined_call_operand.vmem [shape: f32[16,128], index: 1, kind: input, shape index: {}]
  %s2 = inlined_call_operand.vmem [shape: f32[1,128], index: 2, kind: input, shape index: {}]
  %s3 = inlined_call_operand.vmem [shape: f32[128,128], index: 3, kind: input, shape index: {}]
  %s4 = inlined_call_operand.vmem [shape: f32[1,128], index: 4, kind: input, shape index: {}]
  %s5 = inlined_call_operand.vmem [shape: f32[128,4], index: 5, kind: input, shape index: {}]
  %s6 = inlined_call_operand.vmem [shape: f32[1,4], index: 6, kind: input, shape index: {}]
  %s7 = inlined_call_operand.vmem [shape: f32[32,4], index: 7, kind: output, shape index: {}]
  %s8 = sld [smem:[#allocation0]]
  $region61: #{tpu_custom_call.1} parent=0
    _
  %s10 = ssub.s32 1, %s8
  %s11 = scalar_select 0, %s10, %s8
  loop: start=0, step=1, limit=4
  $region2: #{tpu_custom_call.1} parent=0 // loop_pre_header
    _
  $region3: #{tpu_custom_call.1} parent=0 // loop_header
    %s13 = sphi 0, %s17
    %p14 = scmp.ge.s32.totalorder %s13, 4
    %s23 = sphi 0, %s25
    %s26 = sphi 0, %s23
    %s27 = sphi 0, %s26
    %s43 = sphi 0, %s27
    %s47 = sphi 0, %s47
    %s49 = sphi 0, %s47
    %s50 = sphi 0, %s49
    %s64 = sphi 0, %s50
    %s68 = sphi 0, %s68
    %s70 = sphi 0, %s68
    %s71 = sphi 0, %s70
    %s85 = sphi 0, %s71
    %s89 = sphi 0, %s89
    %s91 = sphi 0, %s89
    %s92 = sphi 0, %s91
    %s106 = sphi 0, %s92
    %s110 = sphi 0, %s110
    %s112 = sphi 0, %s110
    %s113 = sphi 0, %s112
    %s127 = sphi 0, %s113
    %s131 = sphi 0, %s131
    %s133 = sphi 0, %s131
    %s134 = sphi 0, %s133
    %s148 = sphi 0, %s134
    %s152 = sphi 0, %s152
    %s154 = sphi 0, %s152
    %s155 = sphi 0, %s154
    %s169 = sphi 0, %s155
    %s175 = sphi 0, %s177
    %s178 = sphi 0, %s175
    %s179 = sphi 0, %s178
    %s195 = sphi 0, %s179
  $region4: #{tpu_custom_call.1} parent=0 // loop_header_branch
    %16 = sbr.rel (%p14) target = $region8
  $region5: #{tpu_custom_call.1} parent=0 // loop_body
    %s18 = ssub.s32 %s13, 1
    %s19 = ssub.s32 %s13, 2
    %s20 = sadd.s32 %s13, 1
    %s21 = ssub.s32 %s13, %s20
    %p22 = scmp.eq.s32.totalorder %s21, 0
    %s24 = sadd.s32 %s23, 1
    %s25 = scalar_select %p22, %s23, %s24
    %p28 = pneg %p22
    %p29 = scmp.eq.s32.totalorder %s13, 1
    %p30 = por %p28, %p29
    %p31 = scmp.ne.s32.totalorder %s23, %s26
    %p32 = scmp.eq.s32.totalorder %s13, 0
    %p33 = por %p31, %p32
    %p34 = scmp.ne.s32.totalorder %s23, %s26
    %p35 = scmp.eq.s32.totalorder %s18, 1
    %p36 = por %p34, %p35
    %p37 = scmp.ne.s32.totalorder %s26, %s27
    %p38 = scmp.eq.s32.totalorder %s18, 0
    %p39 = por %p37, %p38
    %p40 = scmp.ne.s32.totalorder %s26, %s27
    %p41 = scmp.eq.s32.totalorder %s19, 1
    %p42 = por %p40, %p41
    %p44 = scmp.ne.s32.totalorder %s27, %s43
    %p45 = scmp.eq.s32.totalorder %s19, 0
    %p46 = por %p44, %p45
    %s48 = sadd.s32 %s47, 1
    %p51 = scmp.eq.s32.totalorder %s13, 1
    %p52 = scmp.ne.s32.totalorder %s47, %s49
    %p53 = scmp.eq.s32.totalorder %s13, 0
    %p54 = por %p52, %p53
    %p55 = scmp.ne.s32.totalorder %s47, %s49
    %p56 = scmp.eq.s32.totalorder %s18, 1
    %p57 = por %p55, %p56
    %p58 = scmp.ne.s32.totalorder %s49, %s50
    %p59 = scmp.eq.s32.totalorder %s18, 0
    %p60 = por %p58, %p59
    %p61 = scmp.ne.s32.totalorder %s49, %s50
    %p62 = scmp.eq.s32.totalorder %s19, 1
    %p63 = por %p61, %p62
    %p65 = scmp.ne.s32.totalorder %s50, %s64
    %p66 = scmp.eq.s32.totalorder %s19, 0
    %p67 = por %p65, %p66
    %s69 = sadd.s32 %s68, 1
    %p72 = scmp.eq.s32.totalorder %s13, 1
    %p73 = scmp.ne.s32.totalorder %s68, %s70
    %p74 = scmp.eq.s32.totalorder %s13, 0
    %p75 = por %p73, %p74
    %p76 = scmp.ne.s32.totalorder %s68, %s70
    %p77 = scmp.eq.s32.totalorder %s18, 1
    %p78 = por %p76, %p77
    %p79 = scmp.ne.s32.totalorder %s70, %s71
    %p80 = scmp.eq.s32.totalorder %s18, 0
    %p81 = por %p79, %p80
    %p82 = scmp.ne.s32.totalorder %s70, %s71
    %p83 = scmp.eq.s32.totalorder %s19, 1
    %p84 = por %p82, %p83
    %p86 = scmp.ne.s32.totalorder %s71, %s85
    %p87 = scmp.eq.s32.totalorder %s19, 0
    %p88 = por %p86, %p87
    %s90 = sadd.s32 %s89, 1
    %p93 = scmp.eq.s32.totalorder %s13, 1
    %p94 = scmp.ne.s32.totalorder %s89, %s91
    %p95 = scmp.eq.s32.totalorder %s13, 0
    %p96 = por %p94, %p95
    %p97 = scmp.ne.s32.totalorder %s89, %s91
    %p98 = scmp.eq.s32.totalorder %s18, 1
    %p99 = por %p97, %p98
    %p100 = scmp.ne.s32.totalorder %s91, %s92
    %p101 = scmp.eq.s32.totalorder %s18, 0
    %p102 = por %p100, %p101
    %p103 = scmp.ne.s32.totalorder %s91, %s92
    %p104 = scmp.eq.s32.totalorder %s19, 1
    %p105 = por %p103, %p104
    %p107 = scmp.ne.s32.totalorder %s92, %s106
    %p108 = scmp.eq.s32.totalorder %s19, 0
    %p109 = por %p107, %p108
    %s111 = sadd.s32 %s110, 1
    %p114 = scmp.eq.s32.totalorder %s13, 1
    %p115 = scmp.ne.s32.totalorder %s110, %s112
    %p116 = scmp.eq.s32.totalorder %s13, 0
    %p117 = por %p115, %p116
    %p118 = scmp.ne.s32.totalorder %s110, %s112
    %p119 = scmp.eq.s32.totalorder %s18, 1
    %p120 = por %p118, %p119
    %p121 = scmp.ne.s32.totalorder %s112, %s113
    %p122 = scmp.eq.s32.totalorder %s18, 0
    %p123 = por %p121, %p122
    %p124 = scmp.ne.s32.totalorder %s112, %s113
    %p125 = scmp.eq.s32.totalorder %s19, 1
    %p126 = por %p124, %p125
    %p128 = scmp.ne.s32.totalorder %s113, %s127
    %p129 = scmp.eq.s32.totalorder %s19, 0
    %p130 = por %p128, %p129
    %s132 = sadd.s32 %s131, 1
    %p135 = scmp.eq.s32.totalorder %s13, 1
    %p136 = scmp.ne.s32.totalorder %s131, %s133
    %p137 = scmp.eq.s32.totalorder %s13, 0
    %p138 = por %p136, %p137
    %p139 = scmp.ne.s32.totalorder %s131, %s133
    %p140 = scmp.eq.s32.totalorder %s18, 1
    %p141 = por %p139, %p140
    %p142 = scmp.ne.s32.totalorder %s133, %s134
    %p143 = scmp.eq.s32.totalorder %s18, 0
    %p144 = por %p142, %p143
    %p145 = scmp.ne.s32.totalorder %s133, %s134
    %p146 = scmp.eq.s32.totalorder %s19, 1
    %p147 = por %p145, %p146
    %p149 = scmp.ne.s32.totalorder %s134, %s148
    %p150 = scmp.eq.s32.totalorder %s19, 0
    %p151 = por %p149, %p150
    %s153 = sadd.s32 %s152, 1
    %p156 = scmp.eq.s32.totalorder %s13, 1
    %p157 = scmp.ne.s32.totalorder %s152, %s154
    %p158 = scmp.eq.s32.totalorder %s13, 0
    %p159 = por %p157, %p158
    %p160 = scmp.ne.s32.totalorder %s152, %s154
    %p161 = scmp.eq.s32.totalorder %s18, 1
    %p162 = por %p160, %p161
    %p163 = scmp.ne.s32.totalorder %s154, %s155
    %p164 = scmp.eq.s32.totalorder %s18, 0
    %p165 = por %p163, %p164
    %p166 = scmp.ne.s32.totalorder %s154, %s155
    %p167 = scmp.eq.s32.totalorder %s19, 1
    %p168 = por %p166, %p167
    %p170 = scmp.ne.s32.totalorder %s155, %s169
    %p171 = scmp.eq.s32.totalorder %s19, 0
    %p172 = por %p170, %p171
    %s173 = ssub.s32 %s13, %s20
    %p174 = scmp.eq.s32.totalorder %s173, 0
    %s176 = sadd.s32 %s175, 1
    %s177 = scalar_select %p174, %s175, %s176
    %p180 = pneg %p174
    %p181 = scmp.eq.s32.totalorder %s13, 1
    %p182 = por %p180, %p181
    %p183 = scmp.ne.s32.totalorder %s175, %s178
    %p184 = scmp.eq.s32.totalorder %s13, 0
    %p185 = por %p183, %p184
    %p186 = scmp.ne.s32.totalorder %s175, %s178
    %p187 = scmp.eq.s32.totalorder %s18, 1
    %p188 = por %p186, %p187
    %p189 = scmp.ne.s32.totalorder %s178, %s179
    %p190 = scmp.eq.s32.totalorder %s18, 0
    %p191 = por %p189, %p190
    %p192 = scmp.ne.s32.totalorder %s178, %s179
    %p193 = scmp.eq.s32.totalorder %s19, 1
    %p194 = por %p192, %p193
    %p196 = scmp.ne.s32.totalorder %s179, %s195
    %p197 = scmp.eq.s32.totalorder %s19, 0
    %p198 = por %p196, %p197
    %p199 = scmp.le.s32.totalorder 1, %s13
    %p200 = scmp.lt.s32.totalorder %s13, 3
    %p201 = pnand %p199, %p200
    %p202 = pneg %p201
    // Predicated region
    $region9: #{tpu_custom_call.1} parent=5 // pred_check
      _
    $region10: #{tpu_custom_call.1} parent=5 // pred_check_branch
      %204 = sbr.rel (%p201) target = $region12
    $region11: #{tpu_custom_call.1} parent=5 // pred_region
      %s205 = ssub.s32 %s13, 1
      // Predicated region
      $region13: #{tpu_custom_call.1} parent=11 // pred_check
        %p206 = pneg %p60
      $region14: #{tpu_custom_call.1} parent=11 // pred_check_branch
        %208 = sbr.rel (%p206) target = $region16
      $region15: #{tpu_custom_call.1} parent=11 // pred_region
        _
      $region16: #{tpu_custom_call.1} parent=11 // pred_fallthru
        _
      // Predicated region
      $region17: #{tpu_custom_call.1} parent=11 // pred_check
        %p209 = pneg %p81
      $region18: #{tpu_custom_call.1} parent=11 // pred_check_branch
        %211 = sbr.rel (%p209) target = $region20
      $region19: #{tpu_custom_call.1} parent=11 // pred_region
        _
      $region20: #{tpu_custom_call.1} parent=11 // pred_fallthru
        _
      // Predicated region
      $region21: #{tpu_custom_call.1} parent=11 // pred_check
        %p212 = pneg %p102
      $region22: #{tpu_custom_call.1} parent=11 // pred_check_branch
        %214 = sbr.rel (%p212) target = $region24
      $region23: #{tpu_custom_call.1} parent=11 // pred_region
        _
      $region24: #{tpu_custom_call.1} parent=11 // pred_fallthru
        _
      // Predicated region
      $region25: #{tpu_custom_call.1} parent=11 // pred_check
        %p215 = pneg %p123
      $region26: #{tpu_custom_call.1} parent=11 // pred_check_branch
        %217 = sbr.rel (%p215) target = $region28
      $region27: #{tpu_custom_call.1} parent=11 // pred_region
        _
      $region28: #{tpu_custom_call.1} parent=11 // pred_fallthru
        _
      // Predicated region
      $region29: #{tpu_custom_call.1} parent=11 // pred_check
        %p218 = pneg %p144
      $region30: #{tpu_custom_call.1} parent=11 // pred_check_branch
        %220 = sbr.rel (%p218) target = $region32
      $region31: #{tpu_custom_call.1} parent=11 // pred_region
        _
      $region32: #{tpu_custom_call.1} parent=11 // pred_fallthru
        _
      // Predicated region
      $region33: #{tpu_custom_call.1} parent=11 // pred_check
        %p221 = pneg %p165
      $region34: #{tpu_custom_call.1} parent=11 // pred_check_branch
        %223 = sbr.rel (%p221) target = $region36
      $region35: #{tpu_custom_call.1} parent=11 // pred_region
        _
      $region36: #{tpu_custom_call.1} parent=11 // pred_fallthru
        _
    $region12: #{tpu_custom_call.1} parent=5 // pred_fallthru
      _
    %p224 = scmp.lt.s32.totalorder %s13, 2
    // Predicated region
    $region37: #{tpu_custom_call.1} parent=5 // pred_check
      %p225 = pneg %p224
    $region38: #{tpu_custom_call.1} parent=5 // pred_check_branch
      %227 = sbr.rel (%p225) target = $region40
    $region39: #{tpu_custom_call.1} parent=5 // pred_region
      // Predicated region
      $region41: #{tpu_custom_call.1} parent=39 // pred_check
        %p228 = pneg %p33
      $region42: #{tpu_custom_call.1} parent=39 // pred_check_branch
        %230 = sbr.rel (%p228) target = $region44
      $region43: #{tpu_custom_call.1} parent=39 // pred_region
        %s231 = smul.u32 2, %s13
        %p232 = scmp.lt.s32.totalorder %s231, 3
        %s233 = scalar_select %p232, %s231, 3
        %s234 = smul.addr %s233, 8
        %s235 = scalar_lea.vmem %s0, %s234
        %s236 = smul.u32 2, %s13
      $region44: #{tpu_custom_call.1} parent=39 // pred_fallthru
        _
    $region40: #{tpu_custom_call.1} parent=5 // pred_fallthru
      _
    %p237 = scmp.le.s32.totalorder 1, %s13
    %p238 = scmp.lt.s32.totalorder %s13, 3
    %p239 = pnand %p237, %p238
    %p240 = pneg %p239
    // Predicated region
    $region45: #{tpu_custom_call.1} parent=5 // pred_check
      _
    $region46: #{tpu_custom_call.1} parent=5 // pred_check_branch
      %242 = sbr.rel (%p239) target = $region48
    $region47: #{tpu_custom_call.1} parent=5 // pred_region
      %s243 = ssub.s32 %s13, 1
      %s244 = smul.u32 2, %s18
      %p245 = scmp.lt.s32.totalorder %s244, 3
      %s246 = scalar_select %p245, %s244, 3
      %s247 = smul.addr %s246, 8
      %s248 = scalar_lea.vmem %s0, %s247
      %p249 = pneg %p39
      %p250 = pneg %p36
      %p251 = pneg %p60
      %p252 = pneg %p57
      %p253 = pneg %p81
      %p254 = pneg %p78
      %p255 = pneg %p102
      %p256 = pneg %p99
      %p257 = pneg %p123
      %p258 = pneg %p120
      %p259 = pneg %p144
      %p260 = pneg %p141
      %p261 = pneg %p165
      %p262 = pneg %p162
      %p263 = pneg %p191
      %p264 = pneg %p188
      %s265 = smul.u32 2, %s18
      %p266 = scmp.lt.s32.totalorder %s265, 3
      %s267 = scalar_select %p266, %s265, 3
      %s268 = smul.addr %s267, 8
      %s269 = scalar_lea.vmem %s7, %s268
      %s270 = smul.u32 2, %s18
      %p271 = scmp.lt.s32.totalorder %s270, 3
      %s272 = scalar_select %p271, %s270, 3
      %s273 = smul.addr %s272, 8
      %s274 = scalar_lea.vmem %s0, %s273
      %s275 = smul.u32 2, %s18
      %s276 = smul.u32 2, %s18
      %p277 = scmp.lt.s32.totalorder %s276, 3
      %s278 = scalar_select %p277, %s276, 3
      %s279 = smul.addr %s278, 8
      %s280 = scalar_lea.vmem %s7, %s279
      %s281 = smul.u32 2, %s18
      %v282 = vld [vmem:[%s274] sm:$0xff]
      %v283 = vld [vmem:[%s274 + $0x8] sm:$0xff]
      %v284 = vld [vmem:[%s1] sm:$0xff]
      %v285 = vld [vmem:[%s1 + $0x8] sm:$0xff]
      %v286 = vld [vmem:[%s2] sm:$0x1]
      %v288 = vlaneseq
      %v289 = vshrl.u32 %v288, 7
      %v290 = vsub.s32 0, %v289
      %v291 = vrot.slane %v286, %v290
      %vm293 = vcmask 130048
      %v295 = vsel %vm293, %v282, 0
      %v298 = vsel %vm293, %v283, 0
      %300 = vmatprep.subr.mxu0 0.0
      %301 = vmatpush1.msra.mxu0 %v284
      %302 = vmatprep.subr.mxu0 0.0
      %303 = vmatpush1.msra.mxu0 %v285
      %304 = vmatprep.subr.mxu0 0.0
      %305 = vmatpush1.msra.mxu0 0.0
      %306 = vmatprep.subr.mxu0 0.0
      %307 = vmatpush1.msra.mxu0 0.0
      %308 = vmatprep.subr.mxu0 0.0
      %309 = vmatpush1.msra.mxu0 0.0
      %310 = vmatprep.subr.mxu0 0.0
      %311 = vmatpush1.msra.mxu0 0.0
      %312 = vmatprep.subr.mxu0 0.0
      %313 = vmatpush1.msra.mxu0 0.0
      %314 = vmatprep.subr.mxu0 0.0
      %315 = vmatpush1.msra.mxu0 0.0
      %316 = vmatprep.subr.mxu0 0.0
      %317 = vmatpush1.msra.mxu0 0.0
      %318 = vmatprep.subr.mxu0 0.0
      %319 = vmatpush1.msra.mxu0 0.0
      %320 = vmatprep.subr.mxu0 0.0
      %321 = vmatpush1.msra.mxu0 0.0
      %322 = vmatprep.subr.mxu0 0.0
      %323 = vmatpush1.msra.mxu0 0.0
      %324 = vmatprep.subr.mxu0 0.0
      %325 = vmatpush1.msra.mxu0 0.0
      %326 = vmatprep.subr.mxu0 0.0
      %327 = vmatpush1.msra.mxu0 0.0
      %328 = vmatprep.subr.mxu0 0.0
      %329 = vmatpush1.msra.mxu0 0.0
      %330 = vmatprep.subr.mxu0 0.0
      %331 = vmatpush1.msra.mxu0 0.0
      %332 = vmatprep.subr.mxu0 0.0
      %333 = vmatpush1.msra.mxu0 0.0
      %334 = vmatprep.subr.mxu0 0.0
      %335 = vmatpush1.msra.mxu0 0.0
      %336 = vmatprep.subr.mxu0 0.0
      %337 = vmatpush1.msra.mxu0 0.0
      %338 = vmatprep.subr.mxu0 0.0
      %339 = vmatpush1.msra.mxu0 0.0
      %340 = vmatprep.subr.mxu0 0.0
      %341 = vmatpush1.msra.mxu0 0.0
      %342 = vmatprep.subr.mxu0 0.0
      %343 = vmatpush1.msra.mxu0 0.0
      %344 = vmatprep.subr.mxu0 0.0
      %345 = vmatpush1.msra.mxu0 0.0
      %346 = vmatprep.subr.mxu0 0.0
      %347 = vmatpush1.msra.mxu0 0.0
      %348 = vmatprep.subr.mxu0 0.0
      %349 = vmatpush1.msra.mxu0 0.0
      %350 = vmatprep.subr.mxu0 0.0
      %351 = vmatpush1.msra.mxu0 0.0
      %352 = vmatprep.subr.mxu0 0.0
      %353 = vmatpush1.msra.mxu0 0.0
      %354 = vmatprep.subr.mxu0 0.0
      %355 = vmatpush1.msra.mxu0 0.0
      %356 = vmatprep.subr.mxu0 0.0
      %357 = vmatpush1.msra.mxu0 0.0
      %358 = vmatprep.subr.mxu0 0.0
      %359 = vmatpush1.msra.mxu0 0.0
      %360 = vmatprep.subr.mxu0 0.0
      %361 = vmatpush1.msra.mxu0 0.0
      %362 = vmatprep.subr.mxu0 0.0
      %363 = vmatpush1.msra.mxu0 0.0
      %364 = vmatprep.mubr.f32.mxu0 0.0
      %365 = vmatmul.mubr.f32.gmra.mrb[0].mxu0 %v295
      %v366 = vpop.f32.mrb[0].mxu0
      %v367 = vadd.f32 %v291, %v366
      %v368 = vpop.f32.mrb[0].mxu0
      %369 = vmatprep.mubr.f32.mxu0 0.0
      %370 = vmatmul.mubr.f32.gmra.mrb[0].mxu0 %v298
      %v371 = vpop.f32.mrb[0].mxu0
      %v372 = vadd.f32 %v291, %v371
      %v373 = vpop.f32.mrb[0].mxu0
      %374 = vdwg.mxu0
      %v375 = vtanh.pop %v367
      %v376 = vtanh.pop %v372
      %v377 = vld [vmem:[%s3] sm:$0xff]
      %v378 = vld [vmem:[%s3 + $0x8] sm:$0xff]
      %v379 = vld [vmem:[%s3 + $0x10] sm:$0xff]
      %v380 = vld [vmem:[%s3 + $0x18] sm:$0xff]
      %v381 = vld [vmem:[%s3 + $0x20] sm:$0xff]
      %v382 = vld [vmem:[%s3 + $0x28] sm:$0xff]
      %v383 = vld [vmem:[%s3 + $0x30] sm:$0xff]
      %v384 = vld [vmem:[%s3 + $0x38] sm:$0xff]
      %v385 = vld [vmem:[%s3 + $0x40] sm:$0xff]
      %v386 = vld [vmem:[%s3 + $0x48] sm:$0xff]
      %v387 = vld [vmem:[%s3 + $0x50] sm:$0xff]
      %v388 = vld [vmem:[%s3 + $0x58] sm:$0xff]
      %v389 = vld [vmem:[%s3 + $0x60] sm:$0xff]
      %v390 = vld [vmem:[%s3 + $0x68] sm:$0xff]
      %v391 = vld [vmem:[%s3 + $0x70] sm:$0xff]
      %v392 = vld [vmem:[%s3 + $0x78] sm:$0xff]
      %v393 = vld [vmem:[%s4] sm:$0x1]
      %v395 = vlaneseq
      %v396 = vshrl.u32 %v395, 7
      %v397 = vsub.s32 0, %v396
      %v398 = vrot.slane %v393, %v397
      %400 = vmatprep.subr.mxu0 0.0
      %401 = vmatpush1.msra.mxu0 %v377
      %402 = vmatprep.subr.mxu0 0.0
      %403 = vmatpush1.msra.mxu0 %v378
      %404 = vmatprep.subr.mxu0 0.0
      %405 = vmatpush1.msra.mxu0 %v379
      %406 = vmatprep.subr.mxu0 0.0
      %407 = vmatpush1.msra.mxu0 %v380
      %408 = vmatprep.subr.mxu0 0.0
      %409 = vmatpush1.msra.mxu0 %v381
      %410 = vmatprep.subr.mxu0 0.0
      %411 = vmatpush1.msra.mxu0 %v382
      %412 = vmatprep.subr.mxu0 0.0
      %413 = vmatpush1.msra.mxu0 %v383
      %414 = vmatprep.subr.mxu0 0.0
      %415 = vmatpush1.msra.mxu0 %v384
      %416 = vmatprep.subr.mxu0 0.0
      %417 = vmatpush1.msra.mxu0 %v385
      %418 = vmatprep.subr.mxu0 0.0
      %419 = vmatpush1.msra.mxu0 %v386
      %420 = vmatprep.subr.mxu0 0.0
      %421 = vmatpush1.msra.mxu0 %v387
      %422 = vmatprep.subr.mxu0 0.0
      %423 = vmatpush1.msra.mxu0 %v388
      %424 = vmatprep.subr.mxu0 0.0
      %425 = vmatpush1.msra.mxu0 %v389
      %426 = vmatprep.subr.mxu0 0.0
      %427 = vmatpush1.msra.mxu0 %v390
      %428 = vmatprep.subr.mxu0 0.0
      %429 = vmatpush1.msra.mxu0 %v391
      %430 = vmatprep.subr.mxu0 0.0
      %431 = vmatpush1.msra.mxu0 %v392
      %432 = vmatprep.subr.mxu0 0.0
      %433 = vmatpush1.msra.mxu0 0.0
      %434 = vmatprep.subr.mxu0 0.0
      %435 = vmatpush1.msra.mxu0 0.0
      %436 = vmatprep.subr.mxu0 0.0
      %437 = vmatpush1.msra.mxu0 0.0
      %438 = vmatprep.subr.mxu0 0.0
      %439 = vmatpush1.msra.mxu0 0.0
      %440 = vmatprep.subr.mxu0 0.0
      %441 = vmatpush1.msra.mxu0 0.0
      %442 = vmatprep.subr.mxu0 0.0
      %443 = vmatpush1.msra.mxu0 0.0
      %444 = vmatprep.subr.mxu0 0.0
      %445 = vmatpush1.msra.mxu0 0.0
      %446 = vmatprep.subr.mxu0 0.0
      %447 = vmatpush1.msra.mxu0 0.0
      %448 = vmatprep.subr.mxu0 0.0
      %449 = vmatpush1.msra.mxu0 0.0
      %450 = vmatprep.subr.mxu0 0.0
      %451 = vmatpush1.msra.mxu0 0.0
      %452 = vmatprep.subr.mxu0 0.0
      %453 = vmatpush1.msra.mxu0 0.0
      %454 = vmatprep.subr.mxu0 0.0
      %455 = vmatpush1.msra.mxu0 0.0
      %456 = vmatprep.subr.mxu0 0.0
      %457 = vmatpush1.msra.mxu0 0.0
      %458 = vmatprep.subr.mxu0 0.0
      %459 = vmatpush1.msra.mxu0 0.0
      %460 = vmatprep.subr.mxu0 0.0
      %461 = vmatpush1.msra.mxu0 0.0
      %462 = vmatprep.subr.mxu0 0.0
      %463 = vmatpush1.msra.mxu0 0.0
      %464 = vmatprep.mubr.f32.mxu0 0.0
      %465 = vmatmul.mubr.f32.gmra.mrb[0].mxu0 %v375
      %v466 = vpop.f32.mrb[0].mxu0
      %v467 = vadd.f32 %v398, %v466
      %v468 = vpop.f32.mrb[0].mxu0
      %469 = vmatprep.mubr.f32.mxu0 0.0
      %470 = vmatmul.mubr.f32.gmra.mrb[0].mxu0 %v376
      %v471 = vpop.f32.mrb[0].mxu0
      %v472 = vadd.f32 %v398, %v471
      %v473 = vpop.f32.mrb[0].mxu0
      %474 = vdwg.mxu0
      %v475 = vtanh.pop %v467
      %v476 = vtanh.pop %v472
      %v477 = vld [vmem:[%s5] sm:$0xff]
      %v478 = vld [vmem:[%s5 + $0x8] sm:$0xff]
      %v479 = vld [vmem:[%s5 + $0x10] sm:$0xff]
      %v480 = vld [vmem:[%s5 + $0x18] sm:$0xff]
      %v481 = vld [vmem:[%s5 + $0x20] sm:$0xff]
      %v482 = vld [vmem:[%s5 + $0x28] sm:$0xff]
      %v483 = vld [vmem:[%s5 + $0x30] sm:$0xff]
      %v484 = vld [vmem:[%s5 + $0x38] sm:$0xff]
      %v485 = vld [vmem:[%s5 + $0x40] sm:$0xff]
      %v486 = vld [vmem:[%s5 + $0x48] sm:$0xff]
      %v487 = vld [vmem:[%s5 + $0x50] sm:$0xff]
      %v488 = vld [vmem:[%s5 + $0x58] sm:$0xff]
      %v489 = vld [vmem:[%s5 + $0x60] sm:$0xff]
      %v490 = vld [vmem:[%s5 + $0x68] sm:$0xff]
      %v491 = vld [vmem:[%s5 + $0x70] sm:$0xff]
      %v492 = vld [vmem:[%s5 + $0x78] sm:$0xff]
      %v493 = vld [vmem:[%s6] sm:$0x1]
      %v495 = vlaneseq
      %v496 = vshrl.u32 %v495, 7
      %v497 = vsub.s32 0, %v496
      %v498 = vrot.slane %v493, %v497
      %500 = vmatprep.subr.mxu0 0.0
      %501 = vmatpush1.msra.mxu0 %v477
      %502 = vmatprep.subr.mxu0 0.0
      %503 = vmatpush1.msra.mxu0 %v478
      %504 = vmatprep.subr.mxu0 0.0
      %505 = vmatpush1.msra.mxu0 %v479
      %506 = vmatprep.subr.mxu0 0.0
      %507 = vmatpush1.msra.mxu0 %v480
      %508 = vmatprep.subr.mxu0 0.0
      %509 = vmatpush1.msra.mxu0 %v481
      %510 = vmatprep.subr.mxu0 0.0
      %511 = vmatpush1.msra.mxu0 %v482
      %512 = vmatprep.subr.mxu0 0.0
      %513 = vmatpush1.msra.mxu0 %v483
      %514 = vmatprep.subr.mxu0 0.0
      %515 = vmatpush1.msra.mxu0 %v484
      %516 = vmatprep.subr.mxu0 0.0
      %517 = vmatpush1.msra.mxu0 %v485
      %518 = vmatprep.subr.mxu0 0.0
      %519 = vmatpush1.msra.mxu0 %v486
      %520 = vmatprep.subr.mxu0 0.0
      %521 = vmatpush1.msra.mxu0 %v487
      %522 = vmatprep.subr.mxu0 0.0
      %523 = vmatpush1.msra.mxu0 %v488
      %524 = vmatprep.subr.mxu0 0.0
      %525 = vmatpush1.msra.mxu0 %v489
      %526 = vmatprep.subr.mxu0 0.0
      %527 = vmatpush1.msra.mxu0 %v490
      %528 = vmatprep.subr.mxu0 0.0
      %529 = vmatpush1.msra.mxu0 %v491
      %530 = vmatprep.subr.mxu0 0.0
      %531 = vmatpush1.msra.mxu0 %v492
      %532 = vmatprep.subr.mxu0 0.0
      %533 = vmatpush1.msra.mxu0 0.0
      %534 = vmatprep.subr.mxu0 0.0
      %535 = vmatpush1.msra.mxu0 0.0
      %536 = vmatprep.subr.mxu0 0.0
      %537 = vmatpush1.msra.mxu0 0.0
      %538 = vmatprep.subr.mxu0 0.0
      %539 = vmatpush1.msra.mxu0 0.0
      %540 = vmatprep.subr.mxu0 0.0
      %541 = vmatpush1.msra.mxu0 0.0
      %542 = vmatprep.subr.mxu0 0.0
      %543 = vmatpush1.msra.mxu0 0.0
      %544 = vmatprep.subr.mxu0 0.0
      %545 = vmatpush1.msra.mxu0 0.0
      %546 = vmatprep.subr.mxu0 0.0
      %547 = vmatpush1.msra.mxu0 0.0
      %548 = vmatprep.subr.mxu0 0.0
      %549 = vmatpush1.msra.mxu0 0.0
      %550 = vmatprep.subr.mxu0 0.0
      %551 = vmatpush1.msra.mxu0 0.0
      %552 = vmatprep.subr.mxu0 0.0
      %553 = vmatpush1.msra.mxu0 0.0
      %554 = vmatprep.subr.mxu0 0.0
      %555 = vmatpush1.msra.mxu0 0.0
      %556 = vmatprep.subr.mxu0 0.0
      %557 = vmatpush1.msra.mxu0 0.0
      %558 = vmatprep.subr.mxu0 0.0
      %559 = vmatpush1.msra.mxu0 0.0
      %560 = vmatprep.subr.mxu0 0.0
      %561 = vmatpush1.msra.mxu0 0.0
      %562 = vmatprep.subr.mxu0 0.0
      %563 = vmatpush1.msra.mxu0 0.0
      %564 = vmatprep.mubr.f32.mxu0 0.0
      %565 = vmatmul.mubr.f32.gmra.mrb[0].mxu0 %v475
      %v566 = vpop.f32.mrb[0].mxu0
      %v567 = vadd.f32 %v498, %v566
      %v568 = vpop.f32.mrb[0].mxu0
      %569 = vmatprep.mubr.f32.mxu0 0.0
      %570 = vmatmul.mubr.f32.gmra.mrb[0].mxu0 %v476
      %v571 = vpop.f32.mrb[0].mxu0
      %v572 = vadd.f32 %v498, %v571
      %v573 = vpop.f32.mrb[0].mxu0
      %574 = vdwg.mxu0
      %vm575 = vcmask 31744
      %576 = vst.msk [vmem:[%s280] sm:$0xff] %vm575, %v567
      %577 = vst.msk [vmem:[%s280 + $0x8] sm:$0xff] %vm575, %v572
      %s578 = smul.u32 2, %s18
      %p579 = scmp.lt.s32.totalorder %s578, 3
      %s580 = scalar_select %p579, %s578, 3
      %s581 = smul.addr %s580, 8
      %s582 = scalar_lea.vmem %s7, %s581
      // Predicated region
      $region49: #{tpu_custom_call.1} parent=47 // pred_check
        %p583 = pneg %p188
      $region50: #{tpu_custom_call.1} parent=47 // pred_check_branch
        %585 = sbr.rel (%p583) target = $region52
      $region51: #{tpu_custom_call.1} parent=47 // pred_region
        %s586 = smul.u32 2, %s18
      $region52: #{tpu_custom_call.1} parent=47 // pred_fallthru
        _
    $region48: #{tpu_custom_call.1} parent=5 // pred_fallthru
      _
    %p587 = scmp.le.s32.totalorder 2, %s13
    // Predicated region
    $region53: #{tpu_custom_call.1} parent=5 // pred_check
      %p588 = pneg %p587
    $region54: #{tpu_custom_call.1} parent=5 // pred_check_branch
      %590 = sbr.rel (%p588) target = $region56
    $region55: #{tpu_custom_call.1} parent=5 // pred_region
      %s591 = ssub.s32 %s13, 2
      // Predicated region
      $region57: #{tpu_custom_call.1} parent=55 // pred_check
        %p592 = pneg %p194
      $region58: #{tpu_custom_call.1} parent=55 // pred_check_branch
        %594 = sbr.rel (%p592) target = $region60
      $region59: #{tpu_custom_call.1} parent=55 // pred_region
        %s595 = smul.u32 2, %s19
        %p596 = scmp.lt.s32.totalorder %s595, 3
        %s597 = scalar_select %p596, %s595, 3
        %s598 = smul.addr %s597, 8
        %s599 = scalar_lea.vmem %s7, %s598
      $region60: #{tpu_custom_call.1} parent=55 // pred_fallthru
        _
    $region56: #{tpu_custom_call.1} parent=5 // pred_fallthru
      _
  $region6: #{tpu_custom_call.1} parent=0 // loop_footer
    %s17 = sadd.s32 1, %s13
  $region7: #{tpu_custom_call.1} parent=0 // loop_footer_branch
    %12 = sbr.rel target = $region3
  $region8: #{tpu_custom_call.1} parent=0 // loop_exit
    _

// kernel: tpu_custom_call.1
$region0: #{tpu_custom_call.1}
  #allocation0 [shape = 'u32[]', space=smem, size = 0x4, offset = 0x4, fixed_abs, tag = 'smem constant byte address 0x4 - core index']
  #allocation1 [shape = 'u32[144,128]{1,0:T(1,128)}', space=vmem, size = 0x12000, scoped, tag = 'internal scratch']
  %s0 = inlined_call_operand.vmem [shape: f32[32,16], index: 0, kind: input, shape index: {}]
  %s1 = inlined_call_operand.vmem [shape: f32[16,128], index: 1, kind: input, shape index: {}]
  %s2 = inlined_call_operand.vmem [shape: f32[1,128], index: 2, kind: input, shape index: {}]
  %s3 = inlined_call_operand.vmem [shape: f32[128,128], index: 3, kind: input, shape index: {}]
  %s4 = inlined_call_operand.vmem [shape: f32[1,128], index: 4, kind: input, shape index: {}]
  %s5 = inlined_call_operand.vmem [shape: f32[128,4], index: 5, kind: input, shape index: {}]
  %s6 = inlined_call_operand.vmem [shape: f32[1,4], index: 6, kind: input, shape index: {}]
  %s7 = inlined_call_operand.vmem [shape: f32[32,4], index: 7, kind: output, shape index: {}]
  %s8 = sld [smem:[#allocation0]]
  $region61: #{tpu_custom_call.1} parent=0
    _
  %s10 = ssub.s32 1, %s8
  %s11 = scalar_select 0, %s10, %s8
  loop: start=0, step=1, limit=4
  $region2: #{tpu_custom_call.1} parent=0 // loop_pre_header
    _
  $region3: #{tpu_custom_call.1} parent=0 // loop_header
    %s13 = sphi 0, %s17
    %p14 = scmp.ge.s32.totalorder %s13, 4
    %s23 = sphi 0, %s25
    %s26 = sphi 0, %s23
    %s27 = sphi 0, %s26
    %s43 = sphi 0, %s27
    %s47 = sphi 0, %s47
    %s49 = sphi 0, %s47
    %s50 = sphi 0, %s49
    %s64 = sphi 0, %s50
    %s68 = sphi 0, %s68
    %s70 = sphi 0, %s68
    %s71 = sphi 0, %s70
    %s85 = sphi 0, %s71
    %s89 = sphi 0, %s89
    %s91 = sphi 0, %s89
    %s92 = sphi 0, %s91
    %s106 = sphi 0, %s92
    %s110 = sphi 0, %s110
    %s112 = sphi 0, %s110
    %s113 = sphi 0, %s112
    %s127 = sphi 0, %s113
    %s131 = sphi 0, %s131
    %s133 = sphi 0, %s131
    %s134 = sphi 0, %s133
    %s148 = sphi 0, %s134
    %s152 = sphi 0, %s152
    %s154 = sphi 0, %s152
    %s155 = sphi 0, %s154
    %s169 = sphi 0, %s155
    %s175 = sphi 0, %s177
    %s178 = sphi 0, %s175
    %s179 = sphi 0, %s178
    %s195 = sphi 0, %s179
  $region4: #{tpu_custom_call.1} parent=0 // loop_header_branch
    %16 = sbr.rel (%p14) target = $region8
  $region5: #{tpu_custom_call.1} parent=0 // loop_body
    %s18 = ssub.s32 %s13, 1
    %s19 = ssub.s32 %s13, 2
    %s20 = sadd.s32 %s13, 1
    %s21 = ssub.s32 %s13, %s20
    %p22 = scmp.eq.s32.totalorder %s21, 0
    %s24 = sadd.s32 %s23, 1
    %s25 = scalar_select %p22, %s23, %s24
    %p28 = pneg %p22
    %p29 = scmp.eq.s32.totalorder %s13, 1
    %p30 = por %p28, %p29
    %p31 = scmp.ne.s32.totalorder %s23, %s26
    %p32 = scmp.eq.s32.totalorder %s13, 0
    %p33 = por %p31, %p32
    %p34 = scmp.ne.s32.totalorder %s23, %s26
    %p35 = scmp.eq.s32.totalorder %s18, 1
    %p36 = por %p34, %p35
    %p37 = scmp.ne.s32.totalorder %s26, %s27
    %p38 = scmp.eq.s32.totalorder %s18, 0
    %p39 = por %p37, %p38
    %p40 = scmp.ne.s32.totalorder %s26, %s27
    %p41 = scmp.eq.s32.totalorder %s19, 1
    %p42 = por %p40, %p41
    %p44 = scmp.ne.s32.totalorder %s27, %s43
    %p45 = scmp.eq.s32.totalorder %s19, 0
    %p46 = por %p44, %p45
    %s48 = sadd.s32 %s47, 1
    %p51 = scmp.eq.s32.totalorder %s13, 1
    %p52 = scmp.ne.s32.totalorder %s47, %s49
    %p53 = scmp.eq.s32.totalorder %s13, 0
    %p54 = por %p52, %p53
    %p55 = scmp.ne.s32.totalorder %s47, %s49
    %p56 = scmp.eq.s32.totalorder %s18, 1
    %p57 = por %p55, %p56
    %p58 = scmp.ne.s32.totalorder %s49, %s50
    %p59 = scmp.eq.s32.totalorder %s18, 0
    %p60 = por %p58, %p59
    %p61 = scmp.ne.s32.totalorder %s49, %s50
    %p62 = scmp.eq.s32.totalorder %s19, 1
    %p63 = por %p61, %p62
    %p65 = scmp.ne.s32.totalorder %s50, %s64
    %p66 = scmp.eq.s32.totalorder %s19, 0
    %p67 = por %p65, %p66
    %s69 = sadd.s32 %s68, 1
    %p72 = scmp.eq.s32.totalorder %s13, 1
    %p73 = scmp.ne.s32.totalorder %s68, %s70
    %p74 = scmp.eq.s32.totalorder %s13, 0
    %p75 = por %p73, %p74
    %p76 = scmp.ne.s32.totalorder %s68, %s70
    %p77 = scmp.eq.s32.totalorder %s18, 1
    %p78 = por %p76, %p77
    %p79 = scmp.ne.s32.totalorder %s70, %s71
    %p80 = scmp.eq.s32.totalorder %s18, 0
    %p81 = por %p79, %p80
    %p82 = scmp.ne.s32.totalorder %s70, %s71
    %p83 = scmp.eq.s32.totalorder %s19, 1
    %p84 = por %p82, %p83
    %p86 = scmp.ne.s32.totalorder %s71, %s85
    %p87 = scmp.eq.s32.totalorder %s19, 0
    %p88 = por %p86, %p87
    %s90 = sadd.s32 %s89, 1
    %p93 = scmp.eq.s32.totalorder %s13, 1
    %p94 = scmp.ne.s32.totalorder %s89, %s91
    %p95 = scmp.eq.s32.totalorder %s13, 0
    %p96 = por %p94, %p95
    %p97 = scmp.ne.s32.totalorder %s89, %s91
    %p98 = scmp.eq.s32.totalorder %s18, 1
    %p99 = por %p97, %p98
    %p100 = scmp.ne.s32.totalorder %s91, %s92
    %p101 = scmp.eq.s32.totalorder %s18, 0
    %p102 = por %p100, %p101
    %p103 = scmp.ne.s32.totalorder %s91, %s92
    %p104 = scmp.eq.s32.totalorder %s19, 1
    %p105 = por %p103, %p104
    %p107 = scmp.ne.s32.totalorder %s92, %s106
    %p108 = scmp.eq.s32.totalorder %s19, 0
    %p109 = por %p107, %p108
    %s111 = sadd.s32 %s110, 1
    %p114 = scmp.eq.s32.totalorder %s13, 1
    %p115 = scmp.ne.s32.totalorder %s110, %s112
    %p116 = scmp.eq.s32.totalorder %s13, 0
    %p117 = por %p115, %p116
    %p118 = scmp.ne.s32.totalorder %s110, %s112
    %p119 = scmp.eq.s32.totalorder %s18, 1
    %p120 = por %p118, %p119
    %p121 = scmp.ne.s32.totalorder %s112, %s113
    %p122 = scmp.eq.s32.totalorder %s18, 0
    %p123 = por %p121, %p122
    %p124 = scmp.ne.s32.totalorder %s112, %s113
    %p125 = scmp.eq.s32.totalorder %s19, 1
    %p126 = por %p124, %p125
    %p128 = scmp.ne.s32.totalorder %s113, %s127
    %p129 = scmp.eq.s32.totalorder %s19, 0
    %p130 = por %p128, %p129
    %s132 = sadd.s32 %s131, 1
    %p135 = scmp.eq.s32.totalorder %s13, 1
    %p136 = scmp.ne.s32.totalorder %s131, %s133
    %p137 = scmp.eq.s32.totalorder %s13, 0
    %p138 = por %p136, %p137
    %p139 = scmp.ne.s32.totalorder %s131, %s133
    %p140 = scmp.eq.s32.totalorder %s18, 1
    %p141 = por %p139, %p140
    %p142 = scmp.ne.s32.totalorder %s133, %s134
    %p143 = scmp.eq.s32.totalorder %s18, 0
    %p144 = por %p142, %p143
    %p145 = scmp.ne.s32.totalorder %s133, %s134
    %p146 = scmp.eq.s32.totalorder %s19, 1
    %p147 = por %p145, %p146
    %p149 = scmp.ne.s32.totalorder %s134, %s148
    %p150 = scmp.eq.s32.totalorder %s19, 0
    %p151 = por %p149, %p150
    %s153 = sadd.s32 %s152, 1
    %p156 = scmp.eq.s32.totalorder %s13, 1
    %p157 = scmp.ne.s32.totalorder %s152, %s154
    %p158 = scmp.eq.s32.totalorder %s13, 0
    %p159 = por %p157, %p158
    %p160 = scmp.ne.s32.totalorder %s152, %s154
    %p161 = scmp.eq.s32.totalorder %s18, 1
    %p162 = por %p160, %p161
    %p163 = scmp.ne.s32.totalorder %s154, %s155
    %p164 = scmp.eq.s32.totalorder %s18, 0
    %p165 = por %p163, %p164
    %p166 = scmp.ne.s32.totalorder %s154, %s155
    %p167 = scmp.eq.s32.totalorder %s19, 1
    %p168 = por %p166, %p167
    %p170 = scmp.ne.s32.totalorder %s155, %s169
    %p171 = scmp.eq.s32.totalorder %s19, 0
    %p172 = por %p170, %p171
    %s173 = ssub.s32 %s13, %s20
    %p174 = scmp.eq.s32.totalorder %s173, 0
    %s176 = sadd.s32 %s175, 1
    %s177 = scalar_select %p174, %s175, %s176
    %p180 = pneg %p174
    %p181 = scmp.eq.s32.totalorder %s13, 1
    %p182 = por %p180, %p181
    %p183 = scmp.ne.s32.totalorder %s175, %s178
    %p184 = scmp.eq.s32.totalorder %s13, 0
    %p185 = por %p183, %p184
    %p186 = scmp.ne.s32.totalorder %s175, %s178
    %p187 = scmp.eq.s32.totalorder %s18, 1
    %p188 = por %p186, %p187
    %p189 = scmp.ne.s32.totalorder %s178, %s179
    %p190 = scmp.eq.s32.totalorder %s18, 0
    %p191 = por %p189, %p190
    %p192 = scmp.ne.s32.totalorder %s178, %s179
    %p193 = scmp.eq.s32.totalorder %s19, 1
    %p194 = por %p192, %p193
    %p196 = scmp.ne.s32.totalorder %s179, %s195
    %p197 = scmp.eq.s32.totalorder %s19, 0
    %p198 = por %p196, %p197
    %p199 = scmp.le.s32.totalorder 1, %s13
    %p200 = scmp.lt.s32.totalorder %s13, 3
    %p201 = pnand %p199, %p200
    %p202 = pneg %p201
    // Predicated region
    $region9: #{tpu_custom_call.1} parent=5 // pred_check
      _
    $region10: #{tpu_custom_call.1} parent=5 // pred_check_branch
      %204 = sbr.rel (%p201) target = $region12
    $region11: #{tpu_custom_call.1} parent=5 // pred_region
      %s205 = ssub.s32 %s13, 1
      // Predicated region
      $region13: #{tpu_custom_call.1} parent=11 // pred_check
        %p206 = pneg %p60
      $region14: #{tpu_custom_call.1} parent=11 // pred_check_branch
        %208 = sbr.rel (%p206) target = $region16
      $region15: #{tpu_custom_call.1} parent=11 // pred_region
        _
      $region16: #{tpu_custom_call.1} parent=11 // pred_fallthru
        _
      // Predicated region
      $region17: #{tpu_custom_call.1} parent=11 // pred_check
        %p209 = pneg %p81
      $region18: #{tpu_custom_call.1} parent=11 // pred_check_branch
        %211 = sbr.rel (%p209) target = $region20
      $region19: #{tpu_custom_call.1} parent=11 // pred_region
        _
      $region20: #{tpu_custom_call.1} parent=11 // pred_fallthru
        _
      // Predicated region
      $region21: #{tpu_custom_call.1} parent=11 // pred_check
        %p212 = pneg %p102
      $region22: #{tpu_custom_call.1} parent=11 // pred_check_branch
        %214 = sbr.rel (%p212) target = $region24
      $region23: #{tpu_custom_call.1} parent=11 // pred_region
        _
      $region24: #{tpu_custom_call.1} parent=11 // pred_fallthru
        _
      // Predicated region
      $region25: #{tpu_custom_call.1} parent=11 // pred_check
        %p215 = pneg %p123
      $region26: #{tpu_custom_call.1} parent=11 // pred_check_branch
        %217 = sbr.rel (%p215) target = $region28
      $region27: #{tpu_custom_call.1} parent=11 // pred_region
        _
      $region28: #{tpu_custom_call.1} parent=11 // pred_fallthru
        _
      // Predicated region
      $region29: #{tpu_custom_call.1} parent=11 // pred_check
        %p218 = pneg %p144
      $region30: #{tpu_custom_call.1} parent=11 // pred_check_branch
        %220 = sbr.rel (%p218) target = $region32
      $region31: #{tpu_custom_call.1} parent=11 // pred_region
        _
      $region32: #{tpu_custom_call.1} parent=11 // pred_fallthru
        _
      // Predicated region
      $region33: #{tpu_custom_call.1} parent=11 // pred_check
        %p221 = pneg %p165
      $region34: #{tpu_custom_call.1} parent=11 // pred_check_branch
        %223 = sbr.rel (%p221) target = $region36
      $region35: #{tpu_custom_call.1} parent=11 // pred_region
        _
      $region36: #{tpu_custom_call.1} parent=11 // pred_fallthru
        _
    $region12: #{tpu_custom_call.1} parent=5 // pred_fallthru
      _
    %p224 = scmp.lt.s32.totalorder %s13, 2
    // Predicated region
    $region37: #{tpu_custom_call.1} parent=5 // pred_check
      %p225 = pneg %p224
    $region38: #{tpu_custom_call.1} parent=5 // pred_check_branch
      %227 = sbr.rel (%p225) target = $region40
    $region39: #{tpu_custom_call.1} parent=5 // pred_region
      // Predicated region
      $region41: #{tpu_custom_call.1} parent=39 // pred_check
        %p228 = pneg %p33
      $region42: #{tpu_custom_call.1} parent=39 // pred_check_branch
        %230 = sbr.rel (%p228) target = $region44
      $region43: #{tpu_custom_call.1} parent=39 // pred_region
        %s231 = smul.u32 2, %s13
        %p232 = scmp.lt.s32.totalorder %s231, 3
        %s233 = scalar_select %p232, %s231, 3
        %s234 = smul.addr %s233, 8
        %s235 = scalar_lea.vmem %s0, %s234
        %s236 = smul.u32 2, %s13
      $region44: #{tpu_custom_call.1} parent=39 // pred_fallthru
        _
    $region40: #{tpu_custom_call.1} parent=5 // pred_fallthru
      _
    %p237 = scmp.le.s32.totalorder 1, %s13
    %p238 = scmp.lt.s32.totalorder %s13, 3
    %p239 = pnand %p237, %p238
    %p240 = pneg %p239
    // Predicated region
    $region45: #{tpu_custom_call.1} parent=5 // pred_check
      _
    $region46: #{tpu_custom_call.1} parent=5 // pred_check_branch
      %242 = sbr.rel (%p239) target = $region48
    $region47: #{tpu_custom_call.1} parent=5 // pred_region
      %s243 = ssub.s32 %s13, 1
      %s244 = smul.u32 2, %s18
      %p245 = scmp.lt.s32.totalorder %s244, 3
      %s246 = scalar_select %p245, %s244, 3
      %s247 = smul.addr %s246, 8
      %s248 = scalar_lea.vmem %s0, %s247
      %p249 = pneg %p39
      %p250 = pneg %p36
      %p251 = pneg %p60
      %p252 = pneg %p57
      %p253 = pneg %p81
      %p254 = pneg %p78
      %p255 = pneg %p102
      %p256 = pneg %p99
      %p257 = pneg %p123
      %p258 = pneg %p120
      %p259 = pneg %p144
      %p260 = pneg %p141
      %p261 = pneg %p165
      %p262 = pneg %p162
      %p263 = pneg %p191
      %p264 = pneg %p188
      %s265 = smul.u32 2, %s18
      %p266 = scmp.lt.s32.totalorder %s265, 3
      %s267 = scalar_select %p266, %s265, 3
      %s268 = smul.addr %s267, 8
      %s269 = scalar_lea.vmem %s7, %s268
      %s270 = smul.u32 2, %s18
      %p271 = scmp.lt.s32.totalorder %s270, 3
      %s272 = scalar_select %p271, %s270, 3
      %s273 = smul.addr %s272, 8
      %s274 = scalar_lea.vmem %s0, %s273
      %s275 = smul.u32 2, %s18
      %s276 = smul.u32 2, %s18
      %p277 = scmp.lt.s32.totalorder %s276, 3
      %s278 = scalar_select %p277, %s276, 3
      %s279 = smul.addr %s278, 8
      %s280 = scalar_lea.vmem %s7, %s279
      %s281 = smul.u32 2, %s18
      %v282 = vld [vmem:[%s274] sm:$0xff]
      %v283 = vld [vmem:[%s274 + $0x8] sm:$0xff]
      %v284 = vld [vmem:[%s1] sm:$0xff]
      %v285 = vld [vmem:[%s1 + $0x8] sm:$0xff]
      %v286 = vld [vmem:[%s2] sm:$0x1]
      %v288 = vlaneseq
      %v289 = vshrl.u32 %v288, 7
      %v290 = vsub.s32 0, %v289
      %v291 = vrot.slane %v286, %v290
      %vm293 = vcmask 130048
      %v295 = vsel %vm293, %v282, 0
      %v298 = vsel %vm293, %v283, 0
      %300 = vmatprep.subr.mxu0 0.0
      %301 = vmatpush1.msra.mxu0 %v284
      %302 = vmatprep.subr.mxu0 0.0
      %303 = vmatpush1.msra.mxu0 %v285
      %304 = vmatprep.subr.mxu0 0.0
      %305 = vmatpush1.msra.mxu0 0.0
      %306 = vmatprep.subr.mxu0 0.0
      %307 = vmatpush1.msra.mxu0 0.0
      %308 = vmatprep.subr.mxu0 0.0
      %309 = vmatpush1.msra.mxu0 0.0
      %310 = vmatprep.subr.mxu0 0.0
      %311 = vmatpush1.msra.mxu0 0.0
      %312 = vmatprep.subr.mxu0 0.0
      %313 = vmatpush1.msra.mxu0 0.0
      %314 = vmatprep.subr.mxu0 0.0
      %315 = vmatpush1.msra.mxu0 0.0
      %316 = vmatprep.subr.mxu0 0.0
      %317 = vmatpush1.msra.mxu0 0.0
      %318 = vmatprep.subr.mxu0 0.0
      %319 = vmatpush1.msra.mxu0 0.0
      %320 = vmatprep.subr.mxu0 0.0
      %321 = vmatpush1.msra.mxu0 0.0
      %322 = vmatprep.subr.mxu0 0.0
      %323 = vmatpush1.msra.mxu0 0.0
      %324 = vmatprep.subr.mxu0 0.0
      %325 = vmatpush1.msra.mxu0 0.0
      %326 = vmatprep.subr.mxu0 0.0
      %327 = vmatpush1.msra.mxu0 0.0
      %328 = vmatprep.subr.mxu0 0.0
      %329 = vmatpush1.msra.mxu0 0.0
      %330 = vmatprep.subr.mxu0 0.0
      %331 = vmatpush1.msra.mxu0 0.0
      %332 = vmatprep.subr.mxu0 0.0
      %333 = vmatpush1.msra.mxu0 0.0
      %334 = vmatprep.subr.mxu0 0.0
      %335 = vmatpush1.msra.mxu0 0.0
      %336 = vmatprep.subr.mxu0 0.0
      %337 = vmatpush1.msra.mxu0 0.0
      %338 = vmatprep.subr.mxu0 0.0
      %339 = vmatpush1.msra.mxu0 0.0
      %340 = vmatprep.subr.mxu0 0.0
      %341 = vmatpush1.msra.mxu0 0.0
      %342 = vmatprep.subr.mxu0 0.0
      %343 = vmatpush1.msra.mxu0 0.0
      %344 = vmatprep.subr.mxu0 0.0
      %345 = vmatpush1.msra.mxu0 0.0
      %346 = vmatprep.subr.mxu0 0.0
      %347 = vmatpush1.msra.mxu0 0.0
      %348 = vmatprep.subr.mxu0 0.0
      %349 = vmatpush1.msra.mxu0 0.0
      %350 = vmatprep.subr.mxu0 0.0
      %351 = vmatpush1.msra.mxu0 0.0
      %352 = vmatprep.subr.mxu0 0.0
      %353 = vmatpush1.msra.mxu0 0.0
      %354 = vmatprep.subr.mxu0 0.0
      %355 = vmatpush1.msra.mxu0 0.0
      %356 = vmatprep.subr.mxu0 0.0
      %357 = vmatpush1.msra.mxu0 0.0
      %358 = vmatprep.subr.mxu0 0.0
      %359 = vmatpush1.msra.mxu0 0.0
      %360 = vmatprep.subr.mxu0 0.0
      %361 = vmatpush1.msra.mxu0 0.0
      %362 = vmatprep.subr.mxu0 0.0
      %363 = vmatpush1.msra.mxu0 0.0
      %364 = vmatprep.mubr.f32.mxu0 0.0
      %365 = vmatmul.mubr.f32.gmra.mrb[0].mxu0 %v295
      %v366 = vpop.f32.mrb[0].mxu0
      %v367 = vadd.f32 %v291, %v366
      %v368 = vpop.f32.mrb[0].mxu0
      %369 = vmatprep.mubr.f32.mxu0 0.0
      %370 = vmatmul.mubr.f32.gmra.mrb[0].mxu0 %v298
      %v371 = vpop.f32.mrb[0].mxu0
      %v372 = vadd.f32 %v291, %v371
      %v373 = vpop.f32.mrb[0].mxu0
      %374 = vdwg.mxu0
      %v375 = vtanh.pop %v367
      %v376 = vtanh.pop %v372
      %v377 = vld [vmem:[%s3] sm:$0xff]
      %v378 = vld [vmem:[%s3 + $0x8] sm:$0xff]
      %v379 = vld [vmem:[%s3 + $0x10] sm:$0xff]
      %v380 = vld [vmem:[%s3 + $0x18] sm:$0xff]
      %v381 = vld [vmem:[%s3 + $0x20] sm:$0xff]
      %v382 = vld [vmem:[%s3 + $0x28] sm:$0xff]
      %v383 = vld [vmem:[%s3 + $0x30] sm:$0xff]
      %v384 = vld [vmem:[%s3 + $0x38] sm:$0xff]
      %v385 = vld [vmem:[%s3 + $0x40] sm:$0xff]
      %v386 = vld [vmem:[%s3 + $0x48] sm:$0xff]
      %v387 = vld [vmem:[%s3 + $0x50] sm:$0xff]
      %v388 = vld [vmem:[%s3 + $0x58] sm:$0xff]
      %v389 = vld [vmem:[%s3 + $0x60] sm:$0xff]
      %v390 = vld [vmem:[%s3 + $0x68] sm:$0xff]
      %v391 = vld [vmem:[%s3 + $0x70] sm:$0xff]
      %v392 = vld [vmem:[%s3 + $0x78] sm:$0xff]
      %v393 = vld [vmem:[%s4] sm:$0x1]
      %v395 = vlaneseq
      %v396 = vshrl.u32 %v395, 7
      %v397 = vsub.s32 0, %v396
      %v398 = vrot.slane %v393, %v397
      %400 = vmatprep.subr.mxu0 0.0
      %401 = vmatpush1.msra.mxu0 %v377
      %402 = vmatprep.subr.mxu0 0.0
      %403 = vmatpush1.msra.mxu0 %v378
      %404 = vmatprep.subr.mxu0 0.0
      %405 = vmatpush1.msra.mxu0 %v379
      %406 = vmatprep.subr.mxu0 0.0
      %407 = vmatpush1.msra.mxu0 %v380
      %408 = vmatprep.subr.mxu0 0.0
      %409 = vmatpush1.msra.mxu0 %v381
      %410 = vmatprep.subr.mxu0 0.0
      %411 = vmatpush1.msra.mxu0 %v382
      %412 = vmatprep.subr.mxu0 0.0
      %413 = vmatpush1.msra.mxu0 %v383
      %414 = vmatprep.subr.mxu0 0.0
      %415 = vmatpush1.msra.mxu0 %v384
      %416 = vmatprep.subr.mxu0 0.0
      %417 = vmatpush1.msra.mxu0 %v385
      %418 = vmatprep.subr.mxu0 0.0
      %419 = vmatpush1.msra.mxu0 %v386
      %420 = vmatprep.subr.mxu0 0.0
      %421 = vmatpush1.msra.mxu0 %v387
      %422 = vmatprep.subr.mxu0 0.0
      %423 = vmatpush1.msra.mxu0 %v388
      %424 = vmatprep.subr.mxu0 0.0
      %425 = vmatpush1.msra.mxu0 %v389
      %426 = vmatprep.subr.mxu0 0.0
      %427 = vmatpush1.msra.mxu0 %v390
      %428 = vmatprep.subr.mxu0 0.0
      %429 = vmatpush1.msra.mxu0 %v391
      %430 = vmatprep.subr.mxu0 0.0
      %431 = vmatpush1.msra.mxu0 %v392
      %432 = vmatprep.subr.mxu0 0.0
      %433 = vmatpush1.msra.mxu0 0.0
      %434 = vmatprep.subr.mxu0 0.0
      %435 = vmatpush1.msra.mxu0 0.0
      %436 = vmatprep.subr.mxu0 0.0
      %437 = vmatpush1.msra.mxu0 0.0
      %438 = vmatprep.subr.mxu0 0.0
      %439 = vmatpush1.msra.mxu0 0.0
      %440 = vmatprep.subr.mxu0 0.0
      %441 = vmatpush1.msra.mxu0 0.0
      %442 = vmatprep.subr.mxu0 0.0
      %443 = vmatpush1.msra.mxu0 0.0
      %444 = vmatprep.subr.mxu0 0.0
      %445 = vmatpush1.msra.mxu0 0.0
      %446 = vmatprep.subr.mxu0 0.0
      %447 = vmatpush1.msra.mxu0 0.0
      %448 = vmatprep.subr.mxu0 0.0
      %449 = vmatpush1.msra.mxu0 0.0
      %450 = vmatprep.subr.mxu0 0.0
      %451 = vmatpush1.msra.mxu0 0.0
      %452 = vmatprep.subr.mxu0 0.0
      %453 = vmatpush1.msra.mxu0 0.0
      %454 = vmatprep.subr.mxu0 0.0
      %455 = vmatpush1.msra.mxu0 0.0
      %456 = vmatprep.subr.mxu0 0.0
      %457 = vmatpush1.msra.mxu0 0.0
      %458 = vmatprep.subr.mxu0 0.0
      %459 = vmatpush1.msra.mxu0 0.0
      %460 = vmatprep.subr.mxu0 0.0
      %461 = vmatpush1.msra.mxu0 0.0
      %462 = vmatprep.subr.mxu0 0.0
      %463 = vmatpush1.msra.mxu0 0.0
      %464 = vmatprep.mubr.f32.mxu0 0.0
      %465 = vmatmul.mubr.f32.gmra.mrb[0].mxu0 %v375
      %v466 = vpop.f32.mrb[0].mxu0
      %v467 = vadd.f32 %v398, %v466
      %v468 = vpop.f32.mrb[0].mxu0
      %469 = vmatprep.mubr.f32.mxu0 0.0
      %470 = vmatmul.mubr.f32.gmra.mrb[0].mxu0 %v376
      %v471 = vpop.f32.mrb[0].mxu0
      %v472 = vadd.f32 %v398, %v471
      %v473 = vpop.f32.mrb[0].mxu0
      %474 = vdwg.mxu0
      %v475 = vtanh.pop %v467
      %v476 = vtanh.pop %v472
      %v477 = vld [vmem:[%s5] sm:$0xff]
      %v478 = vld [vmem:[%s5 + $0x8] sm:$0xff]
      %v479 = vld [vmem:[%s5 + $0x10] sm:$0xff]
      %v480 = vld [vmem:[%s5 + $0x18] sm:$0xff]
      %v481 = vld [vmem:[%s5 + $0x20] sm:$0xff]
      %v482 = vld [vmem:[%s5 + $0x28] sm:$0xff]
      %v483 = vld [vmem:[%s5 + $0x30] sm:$0xff]
      %v484 = vld [vmem:[%s5 + $0x38] sm:$0xff]
      %v485 = vld [vmem:[%s5 + $0x40] sm:$0xff]
      %v486 = vld [vmem:[%s5 + $0x48] sm:$0xff]
      %v487 = vld [vmem:[%s5 + $0x50] sm:$0xff]
      %v488 = vld [vmem:[%s5 + $0x58] sm:$0xff]
      %v489 = vld [vmem:[%s5 + $0x60] sm:$0xff]
      %v490 = vld [vmem:[%s5 + $0x68] sm:$0xff]
      %v491 = vld [vmem:[%s5 + $0x70] sm:$0xff]
      %v492 = vld [vmem:[%s5 + $0x78] sm:$0xff]
      %v493 = vld [vmem:[%s6] sm:$0x1]
      %v495 = vlaneseq
      %v496 = vshrl.u32 %v495, 7
      %v497 = vsub.s32 0, %v496
      %v498 = vrot.slane %v493, %v497
      %500 = vmatprep.subr.mxu0 0.0
      %501 = vmatpush1.msra.mxu0 %v477
      %502 = vmatprep.subr.mxu0 0.0
      %503 = vmatpush1.msra.mxu0 %v478
      %504 = vmatprep.subr.mxu0 0.0
      %505 = vmatpush1.msra.mxu0 %v479
      %506 = vmatprep.subr.mxu0 0.0
      %507 = vmatpush1.msra.mxu0 %v480
      %508 = vmatprep.subr.mxu0 0.0
      %509 = vmatpush1.msra.mxu0 %v481
      %510 = vmatprep.subr.mxu0 0.0
      %511 = vmatpush1.msra.mxu0 %v482
      %512 = vmatprep.subr.mxu0 0.0
      %513 = vmatpush1.msra.mxu0 %v483
      %514 = vmatprep.subr.mxu0 0.0
      %515 = vmatpush1.msra.mxu0 %v484
      %516 = vmatprep.subr.mxu0 0.0
      %517 = vmatpush1.msra.mxu0 %v485
      %518 = vmatprep.subr.mxu0 0.0
      %519 = vmatpush1.msra.mxu0 %v486
      %520 = vmatprep.subr.mxu0 0.0
      %521 = vmatpush1.msra.mxu0 %v487
      %522 = vmatprep.subr.mxu0 0.0
      %523 = vmatpush1.msra.mxu0 %v488
      %524 = vmatprep.subr.mxu0 0.0
      %525 = vmatpush1.msra.mxu0 %v489
      %526 = vmatprep.subr.mxu0 0.0
      %527 = vmatpush1.msra.mxu0 %v490
      %528 = vmatprep.subr.mxu0 0.0
      %529 = vmatpush1.msra.mxu0 %v491
      %530 = vmatprep.subr.mxu0 0.0
      %531 = vmatpush1.msra.mxu0 %v492
      %532 = vmatprep.subr.mxu0 0.0
      %533 = vmatpush1.msra.mxu0 0.0
      %534 = vmatprep.subr.mxu0 0.0
      %535 = vmatpush1.msra.mxu0 0.0
      %536 = vmatprep.subr.mxu0 0.0
      %537 = vmatpush1.msra.mxu0 0.0
      %538 = vmatprep.subr.mxu0 0.0
      %539 = vmatpush1.msra.mxu0 0.0
      %540 = vmatprep.subr.mxu0 0.0
      %541 = vmatpush1.msra.mxu0 0.0
      %542 = vmatprep.subr.mxu0 0.0
      %543 = vmatpush1.msra.mxu0 0.0
      %544 = vmatprep.subr.mxu0 0.0
      %545 = vmatpush1.msra.mxu0 0.0
      %546 = vmatprep.subr.mxu0 0.0
      %547 = vmatpush1.msra.mxu0 0.0
      %548 = vmatprep.subr.mxu0 0.0
      %549 = vmatpush1.msra.mxu0 0.0
      %550 = vmatprep.subr.mxu0 0.0
      %551 = vmatpush1.msra.mxu0 0.0
      %552 = vmatprep.subr.mxu0 0.0
      %553 = vmatpush1.msra.mxu0 0.0
      %554 = vmatprep.subr.mxu0 0.0
      %555 = vmatpush1.msra.mxu0 0.0
      %556 = vmatprep.subr.mxu0 0.0
      %557 = vmatpush1.msra.mxu0 0.0
      %558 = vmatprep.subr.mxu0 0.0
      %559 = vmatpush1.msra.mxu0 0.0
      %560 = vmatprep.subr.mxu0 0.0
      %561 = vmatpush1.msra.mxu0 0.0
      %562 = vmatprep.subr.mxu0 0.0
      %563 = vmatpush1.msra.mxu0 0.0
      %564 = vmatprep.mubr.f32.mxu0 0.0
      %565 = vmatmul.mubr.f32.gmra.mrb[0].mxu0 %v475
      %v566 = vpop.f32.mrb[0].mxu0
      %v567 = vadd.f32 %v498, %v566
      %v568 = vpop.f32.mrb[0].mxu0
      %569 = vmatprep.mubr.f32.mxu0 0.0
      %570 = vmatmul.mubr.f32.gmra.mrb[0].mxu0 %v476
      %v571 = vpop.f32.mrb[0].mxu0
      %v572 = vadd.f32 %v498, %v571
      %v573 = vpop.f32.mrb[0].mxu0
      %574 = vdwg.mxu0
      %vm575 = vcmask 31744
      %576 = vst.msk [vmem:[%s280] sm:$0xff] %vm575, %v567
      %577 = vst.msk [vmem:[%s280 + $0x8] sm:$0xff] %vm575, %v572
      %s578 = smul.u32 2, %s18
      %p579 = scmp.lt.s32.totalorder %s578, 3
      %s580 = scalar_select %p579, %s578, 3
      %s581 = smul.addr %s580, 8
      %s582 = scalar_lea.vmem %s7, %s581
      // Predicated region
      $region49: #{tpu_custom_call.1} parent=47 // pred_check
        %p583 = pneg %p188
      $region50: #{tpu_custom_call.1} parent=47 // pred_check_branch
        %585 = sbr.rel (%p583) target = $region52
      $region51: #{tpu_custom_call.1} parent=47 // pred_region
        %s586 = smul.u32 2, %s18
      $region52: #{tpu_custom_call.1} parent=47 // pred_fallthru
        _
    $region48: #{tpu_custom_call.1} parent=5 // pred_fallthru
      _
    %p587 = scmp.le.s32.totalorder 2, %s13
    // Predicated region
    $region53: #{tpu_custom_call.1} parent=5 // pred_check
      %p588 = pneg %p587
    $region54: #{tpu_custom_call.1} parent=5 // pred_check_branch
      %590 = sbr.rel (%p588) target = $region56
    $region55: #{tpu_custom_call.1} parent=5 // pred_region
      %s591 = ssub.s32 %s13, 2
      // Predicated region
      $region57: #{tpu_custom_call.1} parent=55 // pred_check
        %p592 = pneg %p194
      $region58: #{tpu_custom_call.1} parent=55 // pred_check_branch
        %594 = sbr.rel (%p592) target = $region60
      $region59: #{tpu_custom_call.1} parent=55 // pred_region
        %s595 = smul.u32 2, %s19
        %p596 = scmp.lt.s32.totalorder %s595, 3
        %s597 = scalar_select %p596, %s595, 3
        %s598 = smul.addr %s597, 8
        %s599 = scalar_lea.vmem %s7, %s598
      $region60: #{tpu_custom_call.1} parent=55 // pred_fallthru
        _
    $region56: #{tpu_custom_call.1} parent=5 // pred_fallthru
      _
  $region6: #{tpu_custom_call.1} parent=0 // loop_footer
    %s17 = sadd.s32 1, %s13
  $region7: #{tpu_custom_call.1} parent=0 // loop_footer_branch
    %12 = sbr.rel target = $region3
  $region8: #{tpu_custom_call.1} parent=0 // loop_exit
    _

</llo_original>
